<compile_context>
chip_gen: v6e
topology: v6e:2x2x1
jax: 0.10.0
libtpu: 0.0.40
codegen_flags: <defaults>
</compile_context>

<pallas_src>
import functools

import jax
import jax.numpy as jnp
from jax.experimental import pallas as pl
from jax.experimental.pallas import tpu as pltpu

OUT_PAD = 128          # lane-dense output width (full 128-lane tile)
NEG_BIG = -1.0e30      # fill for padded logit lanes; exp() underflows to exactly 0


def _rnn_seq_kernel(hid_sz,
                    cat_ref, inp_ref, h0_ref,
                    w1c_ref, w1i_ref, w1h_ref, b1_ref,
                    w2_ref, b2_ref,
                    x_out_ref, h_out_ref):
    """One grid step == one RNN time step.

    `h_out_ref` has a constant index_map, so its block stays VMEM-resident for
    the entire grid and doubles as the hidden-state carry (written back to HBM
    only once, after the last step).
    """
    t = pl.program_id(0)

    @pl.when(t == 0)
    def _():
        h_out_ref[...] = h0_ref[...]

    h = h_out_ref[...]                      # (B, hid)   previous hidden
    inp = inp_ref[0]                        # (B, in_sz) this step's input

    # Fused i2h|i2o stage:  y = [hidden_new | i2o_out]  == torch.cat((hidden, x), 1)
    #   y = cat @ W1_cat + inp @ W1_in + h @ W1_hid + [b_i2h | b_i2o]
    y = (
        jnp.dot(cat_ref[...], w1c_ref[...], preferred_element_type=jnp.float32)
        + jnp.dot(inp, w1i_ref[...], preferred_element_type=jnp.float32)
        + jnp.dot(h, w1h_ref[...], preferred_element_type=jnp.float32)
        + b1_ref[...]
    )                                       # (B, hid + out)

    h_new = y[:, :hid_sz]                   # (B, hid) prefix slice (offset 0)

    # o2o(cat(hidden, x)) == y @ w_o2o + b_o2o.  Columns padded to 128 lanes;
    # padded bias lanes are NEG_BIG so they vanish from the softmax below.
    logits = (
        jnp.dot(y, w2_ref[...], preferred_element_type=jnp.float32) + b2_ref[...]
    )                                       # (B, OUT_PAD)

    # dropout(p=0.05): identity in eval/inference mode.
    # TODO(synk): training-mode dropout (stochastic mask via pltpu.prng_*) not emitted.

    # Numerically stable log_softmax over the last axis.  Padded lanes hold
    # ~-1e30 -> exp underflows to 0, so they contribute nothing to the sum and
    # never win the max (correctness concern from review handled here).
    m = jnp.max(logits, axis=-1, keepdims=True)
    shifted = logits - m
    lse = jnp.log(jnp.sum(jnp.exp(shifted), axis=-1, keepdims=True))
    x_out_ref[0] = (shifted - lse).astype(x_out_ref.dtype)   # lane-dense store

    h_out_ref[...] = h_new.astype(h_out_ref.dtype)           # carry to next step


def pack_params(params, n_categories, input_size, hidden_size, output_size,
                out_pad=OUT_PAD):
    """One-time re-layout of the PyTorch-style weights into kernel form."""
    # Fused first stage [w_i2h | w_i2o], split by input segment rows so the
    # kernel never materializes cat(category, input, hidden).
    w1 = jnp.concatenate([params["w_i2h"], params["w_i2o"]], axis=1)   # (comb, hid+out)
    b1 = jnp.concatenate([params["b_i2h"], params["b_i2o"]], axis=1)   # (1, hid+out)
    s0, s1 = n_categories, n_categories + input_size
    pad = out_pad - output_size
    return {
        "w1_cat": w1[:s0],          # (n_cat,  hid+out)
        "w1_in":  w1[s0:s1],        # (in_sz,  hid+out)
        "w1_hid": w1[s1:],          # (hid,    hid+out)
        "b1":     b1,               # (1,      hid+out)
        # Second stage acts directly on y = [hidden | x]; pad columns to a full
        # 128-lane tile so every output store is lane-dense.
        "w2": jnp.pad(params["w_o2o"], ((0, 0), (0, pad))),            # (hid+out, 128)
        "b2": jnp.pad(params["b_o2o"], ((0, 0), (0, pad)),
                      constant_values=NEG_BIG),                        # (1, 128)
    }


@jax.jit
def rnn_forward_seq(category, inputs, hidden0, packed):
    """Run the full recurrence in one kernel.

    category: (B, n_cat)   inputs: (T, B, in_sz)   hidden0: (B, hid)
    returns (log_probs (T, B, out_sz), hidden_final (B, hid)).
    """
    T, B, in_sz = inputs.shape
    n_cat = category.shape[1]
    hid_sz = hidden0.shape[1]
    out_sz = packed["w1_cat"].shape[1] - hid_sz
    out_pad = packed["b2"].shape[1]

    const2d = lambda shape: pl.BlockSpec(shape, lambda t: (0, 0))  # VMEM-resident

    x_pad, h_final = pl.pallas_call(
        functools.partial(_rnn_seq_kernel, hid_sz),
        out_shape=(
            jax.ShapeDtypeStruct((T, B, out_pad), jnp.float32),
            jax.ShapeDtypeStruct((B, hid_sz), jnp.float32),
        ),
        grid=(T,),
        in_specs=[
            const2d((B, n_cat)),                                # category (resident)
            pl.BlockSpec((1, B, in_sz), lambda t: (t, 0, 0)),   # input streamed per step
            const2d((B, hid_sz)),                               # h0 (resident)
            const2d(packed["w1_cat"].shape),
            const2d(packed["w1_in"].shape),
            const2d(packed["w1_hid"].shape),
            const2d(packed["b1"].shape),
            const2d(packed["w2"].shape),
            const2d(packed["b2"].shape),
        ],
        out_specs=(
            pl.BlockSpec((1, B, out_pad), lambda t: (t, 0, 0)), # per-step log-probs
            const2d((B, hid_sz)),                               # resident hidden carry
        ),
        compiler_params=pltpu.CompilerParams(
            dimension_semantics=("arbitrary",)),                # time axis = recurrence
    )(category, inputs, hidden0,
      packed["w1_cat"], packed["w1_in"], packed["w1_hid"], packed["b1"],
      packed["w2"], packed["b2"])

    return x_pad[:, :, :out_sz], h_final


def rnn_forward(category, inp, hidden, packed):
    """Single-step API matching RNN.forward(category, input, hidden)."""
    x, h = rnn_forward_seq(category, inp[None], hidden, packed)
    return x[0], h


def init_params(key, n_categories, input_size, hidden_size, output_size):
    """nn.Linear-style init; weights stored (in_features, out_features), biases (1, out)."""
    def linear(k, fan_in, fan_out):
        kw, kb = jax.random.split(k)
        bound = 1.0 / jnp.sqrt(fan_in)
        w = jax.random.uniform(kw, (fan_in, fan_out), jnp.float32, -bound, bound)
        b = jax.random.uniform(kb, (1, fan_out), jnp.float32, -bound, bound)
        return w, b

    k1, k2, k3 = jax.random.split(key, 3)
    comb = n_categories + input_size + hidden_size
    w_i2h, b_i2h = linear(k1, comb, hidden_size)
    w_i2o, b_i2o = linear(k2, comb, output_size)
    w_o2o, b_o2o = linear(k3, hidden_size + output_size, output_size)
    return {
        "w_i2h": w_i2h, "b_i2h": b_i2h,
        "w_i2o": w_i2o, "b_i2o": b_i2o,
        "w_o2o": w_o2o, "b_o2o": b_o2o,
    }


def _ref_step(category, inp, hidden, params):
    """Pure-JAX reference for one module forward (eval mode, export=False)."""
    xc = jnp.concatenate([category, inp, hidden], axis=1)
    h = xc @ params["w_i2h"] + params["b_i2h"]
    x = xc @ params["w_i2o"] + params["b_i2o"]
    x = jnp.concatenate([h, x], axis=1) @ params["w_o2o"] + params["b_o2o"]
    return jax.nn.log_softmax(x, axis=1), h


def _ref_seq(category, inputs, hidden, params):
    xs = []
    for t in range(inputs.shape[0]):
        x, hidden = _ref_step(category, inputs[t], hidden, params)
        xs.append(x)
    return jnp.stack(xs), hidden


if __name__ == "__main__":
    # B=8 fills all f32 sublanes; tiny feature sizes match the namegen model.
    B, n_categories, input_size, hidden_size, output_size, T = 8, 4, 8, 32, 8, 8

    key = jax.random.PRNGKey(0)
    kp, kc, ki, kh = jax.random.split(key, 4)

    params = init_params(kp, n_categories, input_size, hidden_size, output_size)
    packed = pack_params(params, n_categories, input_size, hidden_size, output_size)

    category = jax.random.normal(kc, (B, n_categories), jnp.float32)
    inputs = jax.random.normal(ki, (T, B, input_size), jnp.float32)
    hidden0 = jax.random.normal(kh, (B, hidden_size), jnp.float32)

    # Fused whole-sequence kernel (one pallas_call for all T steps).
    x_seq, h_final = rnn_forward_seq(category, inputs, hidden0, packed)
    jax.block_until_ready((x_seq, h_final))

    x_ref, h_ref = _ref_seq(category, inputs, hidden0, params)
    assert jnp.allclose(x_seq, x_ref, atol=1e-4, rtol=1e-4), "sequence x mismatch"
    assert jnp.allclose(h_final, h_ref, atol=1e-4, rtol=1e-4), "sequence hidden mismatch"

    # Single-step API == the PyTorch module's forward (T = 1).
    x1, h1 = rnn_forward(category, inputs[0], hidden0, packed)
    jax.block_until_ready((x1, h1))
    x1_ref, h1_ref = _ref_step(category, inputs[0], hidden0, params)
    assert jnp.allclose(x1, x1_ref, atol=1e-4, rtol=1e-4), "step x mismatch"
    assert jnp.allclose(h1, h1_ref, atol=1e-4, rtol=1e-4), "step hidden mismatch"

    print("KERNEL_OK")
</pallas_src>

<mosaic_0001>
module attributes {stable_mosaic.version = 11 : i64} {
  func.func @_rnn_seq_kernel(%arg0: i32, %arg1: memref<8x4xf32, #tpu.memory_space<vmem>>, %arg2: memref<1x8x8xf32, #tpu.memory_space<vmem>>, %arg3: memref<8x32xf32, #tpu.memory_space<vmem>>, %arg4: memref<4x40xf32, #tpu.memory_space<vmem>>, %arg5: memref<8x40xf32, #tpu.memory_space<vmem>>, %arg6: memref<32x40xf32, #tpu.memory_space<vmem>>, %arg7: memref<1x40xf32, #tpu.memory_space<vmem>>, %arg8: memref<40x128xf32, #tpu.memory_space<vmem>>, %arg9: memref<1x128xf32, #tpu.memory_space<vmem>>, %arg10: memref<1x8x128xf32, #tpu.memory_space<vmem>>, %arg11: memref<8x32xf32, #tpu.memory_space<vmem>>) attributes {dimension_semantics = [#tpu.dimension_semantics<arbitrary>], iteration_bounds = array<i64: 8>, scalar_prefetch = 0 : i64, scratch_operands = 0 : i64, tpu.core_type = #tpu.core_type<tc>, window_params = [{pipeline_mode = #tpu.pipeline_mode<synchronous>, transform_indices = @transform_0, window_bounds = array<i64: 8, 4>}, {transform_indices = @transform_1, window_bounds = array<i64: 1, 8, 8>}, {pipeline_mode = #tpu.pipeline_mode<synchronous>, transform_indices = @transform_2, window_bounds = array<i64: 8, 32>}, {pipeline_mode = #tpu.pipeline_mode<synchronous>, transform_indices = @transform_3, window_bounds = array<i64: 4, 40>}, {pipeline_mode = #tpu.pipeline_mode<synchronous>, transform_indices = @transform_4, window_bounds = array<i64: 8, 40>}, {pipeline_mode = #tpu.pipeline_mode<synchronous>, transform_indices = @transform_5, window_bounds = array<i64: 32, 40>}, {pipeline_mode = #tpu.pipeline_mode<synchronous>, transform_indices = @transform_6, window_bounds = array<i64: 1, 40>}, {pipeline_mode = #tpu.pipeline_mode<synchronous>, transform_indices = @transform_7, window_bounds = array<i64: 40, 128>}, {pipeline_mode = #tpu.pipeline_mode<synchronous>, transform_indices = @transform_8, window_bounds = array<i64: 1, 128>}, {transform_indices = @transform_9, window_bounds = array<i64: 1, 8, 128>}, {pipeline_mode = #tpu.pipeline_mode<synchronous>, transform_indices = @transform_10, window_bounds = array<i64: 8, 32>}]} {
    %c0_i32 = arith.constant 0 : i32
    %0 = arith.cmpi eq, %arg0, %c0_i32 : i32
    %1 = arith.extui %0 : i1 to i32
    %c0_i32_0 = arith.constant 0 : i32
    %2 = arith.cmpi ne, %1, %c0_i32_0 : i32
    scf.if %2 {
      %c0_29 = arith.constant 0 : index
      %c0_30 = arith.constant 0 : index
      %38 = vector.load %arg3[%c0_29, %c0_30] : memref<8x32xf32, #tpu.memory_space<vmem>>, vector<8x32xf32>
      %c0_31 = arith.constant 0 : index
      %c0_32 = arith.constant 0 : index
      %39 = vector.load %arg11[%c0_31, %c0_32] : memref<8x32xf32, #tpu.memory_space<vmem>>, vector<8x32xf32>
      tpu.vector_store %arg11[%c0_31, %c0_32], %38 {strides = array<i32>} : memref<8x32xf32, #tpu.memory_space<vmem>>, vector<8x32xf32>,
    } else {
    }
    %c0 = arith.constant 0 : index
    %c0_1 = arith.constant 0 : index
    %3 = vector.load %arg11[%c0, %c0_1] : memref<8x32xf32, #tpu.memory_space<vmem>>, vector<8x32xf32>
    %c0_2 = arith.constant 0 : index
    %c0_3 = arith.constant 0 : index
    %c0_4 = arith.constant 0 : index
    %4 = vector.load %arg2[%c0_2, %c0_3, %c0_4] : memref<1x8x8xf32, #tpu.memory_space<vmem>>, vector<1x8x8xf32>
    %5 = vector.shape_cast %4 : vector<1x8x8xf32> to vector<8x8xf32>
    %c0_5 = arith.constant 0 : index
    %c0_6 = arith.constant 0 : index
    %6 = vector.load %arg1[%c0_5, %c0_6] : memref<8x4xf32, #tpu.memory_space<vmem>>, vector<8x4xf32>
    %c0_7 = arith.constant 0 : index
    %c0_8 = arith.constant 0 : index
    %7 = vector.load %arg4[%c0_7, %c0_8] : memref<4x40xf32, #tpu.memory_space<vmem>>, vector<4x40xf32>
    %cst = arith.constant dense<0.000000e+00> : vector<8x40xf32>
    %8 = tpu.matmul %6, %7, %cst {dimension_numbers = #tpu.dot_dimension_numbers<[1], [0], [0], [1], [0, 0, 1, 1], [], []>} : vector<8x4xf32>, vector<4x40xf32>, vector<8x40xf32> -> vector<8x40xf32>
    %c0_9 = arith.constant 0 : index
    %c0_10 = arith.constant 0 : index
    %9 = vector.load %arg5[%c0_9, %c0_10] : memref<8x40xf32, #tpu.memory_space<vmem>>, vector<8x40xf32>
    %cst_11 = arith.constant dense<0.000000e+00> : vector<8x40xf32>
    %10 = tpu.matmul %5, %9, %cst_11 {dimension_numbers = #tpu.dot_dimension_numbers<[1], [0], [0], [1], [0, 0, 1, 1], [], []>} : vector<8x8xf32>, vector<8x40xf32>, vector<8x40xf32> -> vector<8x40xf32>
    %11 = arith.addf %8, %10 : vector<8x40xf32>
    %c0_12 = arith.constant 0 : index
    %c0_13 = arith.constant 0 : index
    %12 = vector.load %arg6[%c0_12, %c0_13] : memref<32x40xf32, #tpu.memory_space<vmem>>, vector<32x40xf32>
    %cst_14 = arith.constant dense<0.000000e+00> : vector<8x40xf32>
    %13 = tpu.matmul %3, %12, %cst_14 {dimension_numbers = #tpu.dot_dimension_numbers<[1], [0], [0], [1], [0, 0, 1, 1], [], []>} : vector<8x32xf32>, vector<32x40xf32>, vector<8x40xf32> -> vector<8x40xf32>
    %14 = arith.addf %11, %13 : vector<8x40xf32>
    %c0_15 = arith.constant 0 : index
    %c0_16 = arith.constant 0 : index
    %15 = vector.load %arg7[%c0_15, %c0_16] : memref<1x40xf32, #tpu.memory_space<vmem>>, vector<1x40xf32>
    %16 = vector.broadcast %15 : vector<1x40xf32> to vector<8x40xf32>
    %17 = arith.addf %14, %16 : vector<8x40xf32>
    %18 = vector.extract_strided_slice %17 {offsets = [0, 0], sizes = [8, 32], strides = [1, 1]} : vector<8x40xf32> to vector<8x32xf32>
    %c0_17 = arith.constant 0 : index
    %c0_18 = arith.constant 0 : index
    %19 = vector.load %arg8[%c0_17, %c0_18] : memref<40x128xf32, #tpu.memory_space<vmem>>, vector<40x128xf32>
    %cst_19 = arith.constant dense<0.000000e+00> : vector<8x128xf32>
    %20 = tpu.matmul %17, %19, %cst_19 {dimension_numbers = #tpu.dot_dimension_numbers<[1], [0], [0], [1], [0, 0, 1, 1], [], []>} : vector<8x40xf32>, vector<40x128xf32>, vector<8x128xf32> -> vector<8x128xf32>
    %c0_20 = arith.constant 0 : index
    %c0_21 = arith.constant 0 : index
    %21 = vector.load %arg9[%c0_20, %c0_21] : memref<1x128xf32, #tpu.memory_space<vmem>>, vector<1x128xf32>
    %22 = vector.broadcast %21 : vector<1x128xf32> to vector<8x128xf32>
    %23 = arith.addf %20, %22 : vector<8x128xf32>
    %cst_22 = arith.constant dense<0xFF800000> : vector<8xf32>
    %24 = vector.multi_reduction <maximumf>, %23, %cst_22 [1] : vector<8x128xf32> to vector<8xf32>
    %25 = vector.shape_cast %24 : vector<8xf32> to vector<8x1xf32>
    %26 = vector.broadcast %25 : vector<8x1xf32> to vector<8x128xf32>
    %27 = arith.subf %23, %26 : vector<8x128xf32>
    %28 = math.exp %27 : vector<8x128xf32>
    %cst_23 = arith.constant dense<0.000000e+00> : vector<8xf32>
    %29 = vector.multi_reduction <add>, %28, %cst_23 [1] : vector<8x128xf32> to vector<8xf32>
    %30 = vector.shape_cast %29 : vector<8xf32> to vector<8x1xf32>
    %31 = math.log %30 : vector<8x1xf32>
    %32 = vector.broadcast %31 : vector<8x1xf32> to vector<8x128xf32>
    %33 = arith.subf %27, %32 : vector<8x128xf32>
    %c0_24 = arith.constant 0 : index
    %c0_25 = arith.constant 0 : index
    %c0_26 = arith.constant 0 : index
    %34 = vector.load %arg10[%c0_24, %c0_25, %c0_26] : memref<1x8x128xf32, #tpu.memory_space<vmem>>, vector<1x8x128xf32>
    %35 = vector.shape_cast %34 : vector<1x8x128xf32> to vector<8x128xf32>
    %36 = vector.shape_cast %33 : vector<8x128xf32> to vector<1x8x128xf32>
    tpu.vector_store %arg10[%c0_24, %c0_25, %c0_26], %36 {strides = array<i32>} : memref<1x8x128xf32, #tpu.memory_space<vmem>>, vector<1x8x128xf32>,
    %c0_27 = arith.constant 0 : index
    %c0_28 = arith.constant 0 : index
    %37 = vector.load %arg11[%c0_27, %c0_28] : memref<8x32xf32, #tpu.memory_space<vmem>>, vector<8x32xf32>
    tpu.vector_store %arg11[%c0_27, %c0_28], %18 {strides = array<i32>} : memref<8x32xf32, #tpu.memory_space<vmem>>, vector<8x32xf32>,
    return
  }
  func.func @transform_0(%arg0: i32) -> (i32, i32) {
    %c0_i32 = arith.constant 0 : i32
    %c0_i32_0 = arith.constant 0 : i32
    %c0_i32_1 = arith.constant 0 : i32
    return %c0_i32, %c0_i32_0 : i32, i32
  }
  func.func @transform_1(%arg0: i32) -> (i32, i32, i32) {
    %c0_i32 = arith.constant 0 : i32
    %c0_i32_0 = arith.constant 0 : i32
    %c0_i32_1 = arith.constant 0 : i32
    return %arg0, %c0_i32, %c0_i32_0 : i32, i32, i32
  }
  func.func @transform_2(%arg0: i32) -> (i32, i32) {
    %c0_i32 = arith.constant 0 : i32
    %c0_i32_0 = arith.constant 0 : i32
    %c0_i32_1 = arith.constant 0 : i32
    return %c0_i32, %c0_i32_0 : i32, i32
  }
  func.func @transform_3(%arg0: i32) -> (i32, i32) {
    %c0_i32 = arith.constant 0 : i32
    %c0_i32_0 = arith.constant 0 : i32
    %c0_i32_1 = arith.constant 0 : i32
    return %c0_i32, %c0_i32_0 : i32, i32
  }
  func.func @transform_4(%arg0: i32) -> (i32, i32) {
    %c0_i32 = arith.constant 0 : i32
    %c0_i32_0 = arith.constant 0 : i32
    %c0_i32_1 = arith.constant 0 : i32
    return %c0_i32, %c0_i32_0 : i32, i32
  }
  func.func @transform_5(%arg0: i32) -> (i32, i32) {
    %c0_i32 = arith.constant 0 : i32
    %c0_i32_0 = arith.constant 0 : i32
    %c0_i32_1 = arith.constant 0 : i32
    return %c0_i32, %c0_i32_0 : i32, i32
  }
  func.func @transform_6(%arg0: i32) -> (i32, i32) {
    %c0_i32 = arith.constant 0 : i32
    %c0_i32_0 = arith.constant 0 : i32
    %c0_i32_1 = arith.constant 0 : i32
    return %c0_i32, %c0_i32_0 : i32, i32
  }
  func.func @transform_7(%arg0: i32) -> (i32, i32) {
    %c0_i32 = arith.constant 0 : i32
    %c0_i32_0 = arith.constant 0 : i32
    %c0_i32_1 = arith.constant 0 : i32
    return %c0_i32, %c0_i32_0 : i32, i32
  }
  func.func @transform_8(%arg0: i32) -> (i32, i32) {
    %c0_i32 = arith.constant 0 : i32
    %c0_i32_0 = arith.constant 0 : i32
    %c0_i32_1 = arith.constant 0 : i32
    return %c0_i32, %c0_i32_0 : i32, i32
  }
  func.func @transform_9(%arg0: i32) -> (i32, i32, i32) {
    %c0_i32 = arith.constant 0 : i32
    %c0_i32_0 = arith.constant 0 : i32
    %c0_i32_1 = arith.constant 0 : i32
    return %arg0, %c0_i32, %c0_i32_0 : i32, i32, i32
  }
  func.func @transform_10(%arg0: i32) -> (i32, i32) {
    %c0_i32 = arith.constant 0 : i32
    %c0_i32_0 = arith.constant 0 : i32
    %c0_i32_1 = arith.constant 0 : i32
    return %c0_i32, %c0_i32_0 : i32, i32
  }
}

</mosaic_0001>

<llo_original>
// kernel: rnn_forward_seq.1
$region0: #{rnn_forward_seq.1}
  #allocation0 [shape = 'u32[]', space=smem, size = 0x4, offset = 0x4, fixed_abs, tag = 'smem constant byte address 0x4 - core index']
  #allocation1 [shape = 'u32[144,128]{1,0:T(1,128)}', space=vmem, size = 0x12000, scoped, tag = 'internal scratch']
  %s0 = inlined_call_operand.vmem [shape: f32[8,4], index: 0, kind: input, shape index: {}]
  %s1 = inlined_call_operand.hbm [shape: f32[8,8,8], index: 1, kind: input, shape index: {}]
  %s2 = inlined_call_operand.vmem [shape: f32[8,32], index: 2, kind: input, shape index: {}]
  %s3 = inlined_call_operand.vmem [shape: f32[4,40], index: 3, kind: input, shape index: {}]
  %s4 = inlined_call_operand.vmem [shape: f32[8,40], index: 4, kind: input, shape index: {}]
  %s5 = inlined_call_operand.hbm [shape: f32[32,40], index: 5, kind: input, shape index: {}]
  %s6 = inlined_call_operand.vmem [shape: f32[1,40], index: 6, kind: input, shape index: {}]
  %s7 = inlined_call_operand.hbm [shape: f32[40,128], index: 7, kind: input, shape index: {}]
  %s8 = inlined_call_operand.hbm [shape: f32[1,128], index: 8, kind: input, shape index: {}]
  %s9 = inlined_call_operand.hbm [shape: f32[8,8,128], index: 9, kind: output, shape index: {0}]
  %s10 = inlined_call_operand.hbm [shape: f32[8,32], index: 10, kind: output, shape index: {1}]
  %11 = xla_tuple %s9, %s10
  %s12 = sld [smem:[#allocation0]]
  $region97: #{rnn_forward_seq.1} parent=0
    _
  %s14 = ssub.s32 1, %s12
  %s15 = scalar_select 0, %s14, %s12
  $region1: #{rnn_forward_seq.1} parent=0
    #allocation2 [shape = 'u8[8192]{0}', space=vmem, size = 0x2000, scoped, tag = 'input window, operand 1']
    #allocation3 [shape = 's32[2]{0}', space=sflag, size = 0x8, scoped, tag = 'scoped memory for rnn_forward_seq.1']
    #allocation4 [shape = 's32[2]{0}', space=sflag, size = 0x8, scoped, tag = 'scoped memory for rnn_forward_seq.1']
    #allocation5 [shape = 'u8[16384]{0}', space=vmem, size = 0x4000, scoped, tag = 'input window, operand 5, single buffered']
    #allocation6 [shape = 's32[1]{0}', space=sflag, size = 0x4, scoped, tag = 'scoped memory for rnn_forward_seq.1']
    #allocation7 [shape = 'u8[20480]{0}', space=vmem, size = 0x5000, scoped, tag = 'input window, operand 7, single buffered']
    #allocation8 [shape = 'u8[512]{0}', space=vmem, size = 0x400, scoped, tag = 'input window, operand 8, single buffered']
    #allocation9 [shape = 's32[1]{0}', space=sflag, size = 0x4, scoped, tag = 'scoped memory for rnn_forward_seq.1']
    #allocation10 [shape = 'u8[8192]{0}', space=vmem, size = 0x2000, scoped, tag = 'output window, operand 0']
    #allocation11 [shape = 'u8[4096]{0}', space=vmem, size = 0x1000, scoped, tag = 'output window, operand 1, single buffered']
    #allocation12 [shape = 's32[1]{0}', space=sflag, size = 0x4, scoped, tag = 'scoped memory for rnn_forward_seq.1']
    %16 = vsyncpa [#allocation3], 0
    %s17 = scalar_lea.sflag [#allocation3], 1
    %18 = vsyncpa %s17, 0
    %19 = vsyncpa [#allocation6], 0
    %20 = vsyncpa [#allocation9], 0
    %21 = vsyncpa [#allocation4], 0
    %s22 = scalar_lea.sflag [#allocation4], 1
    %23 = vsyncpa %s22, 0
    %24 = vsyncpa [#allocation12], 0
    loop: start=0, step=1, limit=10
    $region2: #{rnn_forward_seq.1} parent=1 // loop_pre_header
      _
    $region3: #{rnn_forward_seq.1} parent=1 // loop_header
      %s26 = sphi 0, %s30
      %p27 = scmp.ge.s32.totalorder %s26, 10
      %s34 = sphi 0, %s34
      %s36 = sphi 0, %s34
      %s37 = sphi 0, %s36
      %s51 = sphi 0, %s37
      %s57 = sphi 0, %s59
      %s60 = sphi 0, %s57
      %s61 = sphi 0, %s60
      %s77 = sphi 0, %s61
      %s81 = sphi 0, %s81
      %s83 = sphi 0, %s81
      %s84 = sphi 0, %s83
      %s98 = sphi 0, %s84
      %s102 = sphi 0, %s102
      %s104 = sphi 0, %s102
      %s105 = sphi 0, %s104
      %s119 = sphi 0, %s105
      %s123 = sphi 0, %s123
      %s125 = sphi 0, %s123
      %s126 = sphi 0, %s125
      %s140 = sphi 0, %s126
      %s144 = sphi 0, %s144
      %s146 = sphi 0, %s144
      %s147 = sphi 0, %s146
      %s161 = sphi 0, %s147
      %s165 = sphi 0, %s165
      %s167 = sphi 0, %s165
      %s168 = sphi 0, %s167
      %s182 = sphi 0, %s168
      %s186 = sphi 0, %s186
      %s188 = sphi 0, %s186
      %s189 = sphi 0, %s188
      %s203 = sphi 0, %s189
      %s207 = sphi 0, %s207
      %s209 = sphi 0, %s207
      %s210 = sphi 0, %s209
      %s224 = sphi 0, %s210
      %s230 = sphi 0, %s232
      %s233 = sphi 0, %s230
      %s234 = sphi 0, %s233
      %s250 = sphi 0, %s234
      %s254 = sphi 0, %s254
      %s256 = sphi 0, %s254
      %s257 = sphi 0, %s256
      %s271 = sphi 0, %s257
    $region4: #{rnn_forward_seq.1} parent=1 // loop_header_branch
      %29 = sbr.rel (%p27) target = $region8
    $region5: #{rnn_forward_seq.1} parent=1 // loop_body
      %s31 = ssub.s32 %s26, 1
      %s32 = ssub.s32 %s26, 2
      %s33 = sadd.s32 %s26, 1
      %s35 = sadd.s32 %s34, 1
      %p38 = scmp.eq.s32.totalorder %s26, 7
      %p39 = scmp.ne.s32.totalorder %s34, %s36
      %p40 = scmp.eq.s32.totalorder %s26, 0
      %p41 = por %p39, %p40
      %p42 = scmp.ne.s32.totalorder %s34, %s36
      %p43 = scmp.eq.s32.totalorder %s31, 7
      %p44 = por %p42, %p43
      %p45 = scmp.ne.s32.totalorder %s36, %s37
      %p46 = scmp.eq.s32.totalorder %s31, 0
      %p47 = por %p45, %p46
      %p48 = scmp.ne.s32.totalorder %s36, %s37
      %p49 = scmp.eq.s32.totalorder %s32, 7
      %p50 = por %p48, %p49
      %p52 = scmp.ne.s32.totalorder %s37, %s51
      %p53 = scmp.eq.s32.totalorder %s32, 0
      %p54 = por %p52, %p53
      %s55 = ssub.s32 %s26, %s33
      %p56 = scmp.eq.s32.totalorder %s55, 0
      %s58 = sadd.s32 %s57, 1
      %s59 = scalar_select %p56, %s57, %s58
      %p62 = pneg %p56
      %p63 = scmp.eq.s32.totalorder %s26, 7
      %p64 = por %p62, %p63
      %p65 = scmp.ne.s32.totalorder %s57, %s60
      %p66 = scmp.eq.s32.totalorder %s26, 0
      %p67 = por %p65, %p66
      %p68 = scmp.ne.s32.totalorder %s57, %s60
      %p69 = scmp.eq.s32.totalorder %s31, 7
      %p70 = por %p68, %p69
      %p71 = scmp.ne.s32.totalorder %s60, %s61
      %p72 = scmp.eq.s32.totalorder %s31, 0
      %p73 = por %p71, %p72
      %p74 = scmp.ne.s32.totalorder %s60, %s61
      %p75 = scmp.eq.s32.totalorder %s32, 7
      %p76 = por %p74, %p75
      %p78 = scmp.ne.s32.totalorder %s61, %s77
      %p79 = scmp.eq.s32.totalorder %s32, 0
      %p80 = por %p78, %p79
      %s82 = sadd.s32 %s81, 1
      %p85 = scmp.eq.s32.totalorder %s26, 7
      %p86 = scmp.ne.s32.totalorder %s81, %s83
      %p87 = scmp.eq.s32.totalorder %s26, 0
      %p88 = por %p86, %p87
      %p89 = scmp.ne.s32.totalorder %s81, %s83
      %p90 = scmp.eq.s32.totalorder %s31, 7
      %p91 = por %p89, %p90
      %p92 = scmp.ne.s32.totalorder %s83, %s84
      %p93 = scmp.eq.s32.totalorder %s31, 0
      %p94 = por %p92, %p93
      %p95 = scmp.ne.s32.totalorder %s83, %s84
      %p96 = scmp.eq.s32.totalorder %s32, 7
      %p97 = por %p95, %p96
      %p99 = scmp.ne.s32.totalorder %s84, %s98
      %p100 = scmp.eq.s32.totalorder %s32, 0
      %p101 = por %p99, %p100
      %s103 = sadd.s32 %s102, 1
      %p106 = scmp.eq.s32.totalorder %s26, 7
      %p107 = scmp.ne.s32.totalorder %s102, %s104
      %p108 = scmp.eq.s32.totalorder %s26, 0
      %p109 = por %p107, %p108
      %p110 = scmp.ne.s32.totalorder %s102, %s104
      %p111 = scmp.eq.s32.totalorder %s31, 7
      %p112 = por %p110, %p111
      %p113 = scmp.ne.s32.totalorder %s104, %s105
      %p114 = scmp.eq.s32.totalorder %s31, 0
      %p115 = por %p113, %p114
      %p116 = scmp.ne.s32.totalorder %s104, %s105
      %p117 = scmp.eq.s32.totalorder %s32, 7
      %p118 = por %p116, %p117
      %p120 = scmp.ne.s32.totalorder %s105, %s119
      %p121 = scmp.eq.s32.totalorder %s32, 0
      %p122 = por %p120, %p121
      %s124 = sadd.s32 %s123, 1
      %p127 = scmp.eq.s32.totalorder %s26, 7
      %p128 = scmp.ne.s32.totalorder %s123, %s125
      %p129 = scmp.eq.s32.totalorder %s26, 0
      %p130 = por %p128, %p129
      %p131 = scmp.ne.s32.totalorder %s123, %s125
      %p132 = scmp.eq.s32.totalorder %s31, 7
      %p133 = por %p131, %p132
      %p134 = scmp.ne.s32.totalorder %s125, %s126
      %p135 = scmp.eq.s32.totalorder %s31, 0
      %p136 = por %p134, %p135
      %p137 = scmp.ne.s32.totalorder %s125, %s126
      %p138 = scmp.eq.s32.totalorder %s32, 7
      %p139 = por %p137, %p138
      %p141 = scmp.ne.s32.totalorder %s126, %s140
      %p142 = scmp.eq.s32.totalorder %s32, 0
      %p143 = por %p141, %p142
      %s145 = sadd.s32 %s144, 1
      %p148 = scmp.eq.s32.totalorder %s26, 7
      %p149 = scmp.ne.s32.totalorder %s144, %s146
      %p150 = scmp.eq.s32.totalorder %s26, 0
      %p151 = por %p149, %p150
      %p152 = scmp.ne.s32.totalorder %s144, %s146
      %p153 = scmp.eq.s32.totalorder %s31, 7
      %p154 = por %p152, %p153
      %p155 = scmp.ne.s32.totalorder %s146, %s147
      %p156 = scmp.eq.s32.totalorder %s31, 0
      %p157 = por %p155, %p156
      %p158 = scmp.ne.s32.totalorder %s146, %s147
      %p159 = scmp.eq.s32.totalorder %s32, 7
      %p160 = por %p158, %p159
      %p162 = scmp.ne.s32.totalorder %s147, %s161
      %p163 = scmp.eq.s32.totalorder %s32, 0
      %p164 = por %p162, %p163
      %s166 = sadd.s32 %s165, 1
      %p169 = scmp.eq.s32.totalorder %s26, 7
      %p170 = scmp.ne.s32.totalorder %s165, %s167
      %p171 = scmp.eq.s32.totalorder %s26, 0
      %p172 = por %p170, %p171
      %p173 = scmp.ne.s32.totalorder %s165, %s167
      %p174 = scmp.eq.s32.totalorder %s31, 7
      %p175 = por %p173, %p174
      %p176 = scmp.ne.s32.totalorder %s167, %s168
      %p177 = scmp.eq.s32.totalorder %s31, 0
      %p178 = por %p176, %p177
      %p179 = scmp.ne.s32.totalorder %s167, %s168
      %p180 = scmp.eq.s32.totalorder %s32, 7
      %p181 = por %p179, %p180
      %p183 = scmp.ne.s32.totalorder %s168, %s182
      %p184 = scmp.eq.s32.totalorder %s32, 0
      %p185 = por %p183, %p184
      %s187 = sadd.s32 %s186, 1
      %p190 = scmp.eq.s32.totalorder %s26, 7
      %p191 = scmp.ne.s32.totalorder %s186, %s188
      %p192 = scmp.eq.s32.totalorder %s26, 0
      %p193 = por %p191, %p192
      %p194 = scmp.ne.s32.totalorder %s186, %s188
      %p195 = scmp.eq.s32.totalorder %s31, 7
      %p196 = por %p194, %p195
      %p197 = scmp.ne.s32.totalorder %s188, %s189
      %p198 = scmp.eq.s32.totalorder %s31, 0
      %p199 = por %p197, %p198
      %p200 = scmp.ne.s32.totalorder %s188, %s189
      %p201 = scmp.eq.s32.totalorder %s32, 7
      %p202 = por %p200, %p201
      %p204 = scmp.ne.s32.totalorder %s189, %s203
      %p205 = scmp.eq.s32.totalorder %s32, 0
      %p206 = por %p204, %p205
      %s208 = sadd.s32 %s207, 1
      %p211 = scmp.eq.s32.totalorder %s26, 7
      %p212 = scmp.ne.s32.totalorder %s207, %s209
      %p213 = scmp.eq.s32.totalorder %s26, 0
      %p214 = por %p212, %p213
      %p215 = scmp.ne.s32.totalorder %s207, %s209
      %p216 = scmp.eq.s32.totalorder %s31, 7
      %p217 = por %p215, %p216
      %p218 = scmp.ne.s32.totalorder %s209, %s210
      %p219 = scmp.eq.s32.totalorder %s31, 0
      %p220 = por %p218, %p219
      %p221 = scmp.ne.s32.totalorder %s209, %s210
      %p222 = scmp.eq.s32.totalorder %s32, 7
      %p223 = por %p221, %p222
      %p225 = scmp.ne.s32.totalorder %s210, %s224
      %p226 = scmp.eq.s32.totalorder %s32, 0
      %p227 = por %p225, %p226
      %s228 = ssub.s32 %s26, %s33
      %p229 = scmp.eq.s32.totalorder %s228, 0
      %s231 = sadd.s32 %s230, 1
      %s232 = scalar_select %p229, %s230, %s231
      %p235 = pneg %p229
      %p236 = scmp.eq.s32.totalorder %s26, 7
      %p237 = por %p235, %p236
      %p238 = scmp.ne.s32.totalorder %s230, %s233
      %p239 = scmp.eq.s32.totalorder %s26, 0
      %p240 = por %p238, %p239
      %p241 = scmp.ne.s32.totalorder %s230, %s233
      %p242 = scmp.eq.s32.totalorder %s31, 7
      %p243 = por %p241, %p242
      %p244 = scmp.ne.s32.totalorder %s233, %s234
      %p245 = scmp.eq.s32.totalorder %s31, 0
      %p246 = por %p244, %p245
      %p247 = scmp.ne.s32.totalorder %s233, %s234
      %p248 = scmp.eq.s32.totalorder %s32, 7
      %p249 = por %p247, %p248
      %p251 = scmp.ne.s32.totalorder %s234, %s250
      %p252 = scmp.eq.s32.totalorder %s32, 0
      %p253 = por %p251, %p252
      %s255 = sadd.s32 %s254, 1
      %p258 = scmp.eq.s32.totalorder %s26, 7
      %p259 = scmp.ne.s32.totalorder %s254, %s256
      %p260 = scmp.eq.s32.totalorder %s26, 0
      %p261 = por %p259, %p260
      %p262 = scmp.ne.s32.totalorder %s254, %s256
      %p263 = scmp.eq.s32.totalorder %s31, 7
      %p264 = por %p262, %p263
      %p265 = scmp.ne.s32.totalorder %s256, %s257
      %p266 = scmp.eq.s32.totalorder %s31, 0
      %p267 = por %p265, %p266
      %p268 = scmp.ne.s32.totalorder %s256, %s257
      %p269 = scmp.eq.s32.totalorder %s32, 7
      %p270 = por %p268, %p269
      %p272 = scmp.ne.s32.totalorder %s257, %s271
      %p273 = scmp.eq.s32.totalorder %s32, 0
      %p274 = por %p272, %p273
      %p275 = scmp.le.s32.totalorder 1, %s26
      %p276 = scmp.lt.s32.totalorder %s26, 9
      %p277 = pnand %p275, %p276
      %p278 = pneg %p277
      // Predicated region
      $region9: #{rnn_forward_seq.1} parent=5 // pred_check
        _
      $region10: #{rnn_forward_seq.1} parent=5 // pred_check_branch
        %280 = sbr.rel (%p277) target = $region12
      $region11: #{rnn_forward_seq.1} parent=5 // pred_region
        %s281 = ssub.s32 %s26, 1
        // Predicated region
        $region13: #{rnn_forward_seq.1} parent=11 // pred_check
          %p282 = pneg %p47
        $region14: #{rnn_forward_seq.1} parent=11 // pred_check_branch
          %284 = sbr.rel (%p282) target = $region16
        $region15: #{rnn_forward_seq.1} parent=11 // pred_region
          _
        $region16: #{rnn_forward_seq.1} parent=11 // pred_fallthru
          _
        // Predicated region
        $region17: #{rnn_forward_seq.1} parent=11 // pred_check
          %p285 = pneg %p94
        $region18: #{rnn_forward_seq.1} parent=11 // pred_check_branch
          %287 = sbr.rel (%p285) target = $region20
        $region19: #{rnn_forward_seq.1} parent=11 // pred_region
          _
        $region20: #{rnn_forward_seq.1} parent=11 // pred_fallthru
          _
        // Predicated region
        $region21: #{rnn_forward_seq.1} parent=11 // pred_check
          %p288 = pneg %p115
        $region22: #{rnn_forward_seq.1} parent=11 // pred_check_branch
          %290 = sbr.rel (%p288) target = $region24
        $region23: #{rnn_forward_seq.1} parent=11 // pred_region
          _
        $region24: #{rnn_forward_seq.1} parent=11 // pred_fallthru
          _
        // Predicated region
        $region25: #{rnn_forward_seq.1} parent=11 // pred_check
          %p291 = pneg %p136
        $region26: #{rnn_forward_seq.1} parent=11 // pred_check_branch
          %293 = sbr.rel (%p291) target = $region28
        $region27: #{rnn_forward_seq.1} parent=11 // pred_region
          _
        $region28: #{rnn_forward_seq.1} parent=11 // pred_fallthru
          _
        // Predicated region
        $region29: #{rnn_forward_seq.1} parent=11 // pred_check
          %p294 = pneg %p157
        $region30: #{rnn_forward_seq.1} parent=11 // pred_check_branch
          %296 = sbr.rel (%p294) target = $region32
        $region31: #{rnn_forward_seq.1} parent=11 // pred_region
          %s298 = ssub.s32 512, 512
          %299 = vsyncadd [#allocation6], %s298
          %s300 = sshll.u32 [#allocation5], 4
          %s301 = int_to_ptr.vmem [resolvable:$true] %s300
          %306 = dma.hbm_to_vmem [thread:$0]  %s5, 512, %s301, [#allocation6], 128, 128, 8
        $region32: #{rnn_forward_seq.1} parent=11 // pred_fallthru
          _
        // Predicated region
        $region33: #{rnn_forward_seq.1} parent=11 // pred_check
          %p307 = pneg %p178
        $region34: #{rnn_forward_seq.1} parent=11 // pred_check_branch
          %309 = sbr.rel (%p307) target = $region36
        $region35: #{rnn_forward_seq.1} parent=11 // pred_region
          _
        $region36: #{rnn_forward_seq.1} parent=11 // pred_fallthru
          _
        // Predicated region
        $region37: #{rnn_forward_seq.1} parent=11 // pred_check
          %p310 = pneg %p199
        $region38: #{rnn_forward_seq.1} parent=11 // pred_check_branch
          %312 = sbr.rel (%p310) target = $region40
        $region39: #{rnn_forward_seq.1} parent=11 // pred_region
          %s314 = ssub.s32 640, 640
          %315 = vsyncadd [#allocation6], %s314
          %s316 = sshll.u32 [#allocation7], 4
          %s317 = int_to_ptr.vmem [resolvable:$true] %s316
          %322 = dma.hbm_to_vmem [thread:$0]  %s7, 640, %s317, [#allocation6], 128, 128, 8
        $region40: #{rnn_forward_seq.1} parent=11 // pred_fallthru
          _
        // Predicated region
        $region41: #{rnn_forward_seq.1} parent=11 // pred_check
          %p323 = pneg %p220
        $region42: #{rnn_forward_seq.1} parent=11 // pred_check_branch
          %325 = sbr.rel (%p323) target = $region44
        $region43: #{rnn_forward_seq.1} parent=11 // pred_region
          %s327 = ssub.s32 16, 16
          %328 = vsyncadd [#allocation9], %s327
          %s330 = sshll.u32 [#allocation8], 4
          %s331 = int_to_ptr.vmem [resolvable:$true] %s330
          %333 = dma.hbm_to_vmem [thread:$0]  %s8, 16, %s331, [#allocation9]
        $region44: #{rnn_forward_seq.1} parent=11 // pred_fallthru
          _
      $region12: #{rnn_forward_seq.1} parent=5 // pred_fallthru
        _
      %p334 = scmp.lt.s32.totalorder %s26, 8
      // Predicated region
      $region45: #{rnn_forward_seq.1} parent=5 // pred_check
        %p335 = pneg %p334
      $region46: #{rnn_forward_seq.1} parent=5 // pred_check_branch
        %337 = sbr.rel (%p335) target = $region48
      $region47: #{rnn_forward_seq.1} parent=5 // pred_region
        // Predicated region
        $region49: #{rnn_forward_seq.1} parent=47 // pred_check
          %p338 = pneg %p67
        $region50: #{rnn_forward_seq.1} parent=47 // pred_check_branch
          %340 = sbr.rel (%p338) target = $region52
        $region51: #{rnn_forward_seq.1} parent=47 // pred_region
          %s341 = sand.u32 %s57, 1
          %s342 = scalar_lea.sflag [#allocation3], %s341
          %s343 = sand.u32 %s57, 1
          %s344 = smul.addr %s343, 8
          %s345 = scalar_lea.vmem [#allocation2], %s344
          %s347 = ssub.s32 128, 128
          %348 = vsyncadd %s342, %s347
          %s349 = smul.addr %s26, 128
          %s350 = scalar_lea.hbm %s1, %s349
          %s352 = sshll.u32 %s345, 4
          %s353 = int_to_ptr.vmem [resolvable:$true] %s352
          %355 = dma.hbm_to_vmem [thread:$0]  %s350, 128, %s353, %s342
        $region52: #{rnn_forward_seq.1} parent=47 // pred_fallthru
          _
      $region48: #{rnn_forward_seq.1} parent=5 // pred_fallthru
        _
      %p356 = scmp.le.s32.totalorder 1, %s26
      %p357 = scmp.lt.s32.totalorder %s26, 9
      %p358 = pnand %p356, %p357
      %p359 = pneg %p358
      // Predicated region
      $region53: #{rnn_forward_seq.1} parent=5 // pred_check
        _
      $region54: #{rnn_forward_seq.1} parent=5 // pred_check_branch
        %361 = sbr.rel (%p358) target = $region56
      $region55: #{rnn_forward_seq.1} parent=5 // pred_region
        %s362 = ssub.s32 %s26, 1
        %s363 = sand.u32 %s60, 1
        %s364 = scalar_lea.sflag [#allocation3], %s363
        %s365 = sand.u32 %s60, 1
        %s366 = smul.addr %s365, 8
        %s367 = scalar_lea.vmem [#allocation2], %s366
        // Predicated region
        $region57: #{rnn_forward_seq.1} parent=55 // pred_check
          %p368 = pneg %p73
        $region58: #{rnn_forward_seq.1} parent=55 // pred_check_branch
          %370 = sbr.rel (%p368) target = $region60
        $region59: #{rnn_forward_seq.1} parent=55 // pred_region
          %371 = dma.done %s364, 128
        $region60: #{rnn_forward_seq.1} parent=55 // pred_fallthru
          _
        // Predicated region
        $region61: #{rnn_forward_seq.1} parent=55 // pred_check
          %p372 = pneg %p157
        $region62: #{rnn_forward_seq.1} parent=55 // pred_check_branch
          %374 = sbr.rel (%p372) target = $region64
        $region63: #{rnn_forward_seq.1} parent=55 // pred_region
          %375 = dma.done [#allocation6], 512
        $region64: #{rnn_forward_seq.1} parent=55 // pred_fallthru
          _
        // Predicated region
        $region65: #{rnn_forward_seq.1} parent=55 // pred_check
          %p376 = pneg %p199
        $region66: #{rnn_forward_seq.1} parent=55 // pred_check_branch
          %378 = sbr.rel (%p376) target = $region68
        $region67: #{rnn_forward_seq.1} parent=55 // pred_region
          %379 = dma.done [#allocation6], 640
        $region68: #{rnn_forward_seq.1} parent=55 // pred_fallthru
          _
        // Predicated region
        $region69: #{rnn_forward_seq.1} parent=55 // pred_check
          %p380 = pneg %p220
        $region70: #{rnn_forward_seq.1} parent=55 // pred_check_branch
          %382 = sbr.rel (%p380) target = $region72
        $region71: #{rnn_forward_seq.1} parent=55 // pred_region
          %383 = dma.done [#allocation9], 16
        $region72: #{rnn_forward_seq.1} parent=55 // pred_fallthru
          _
        %p384 = pneg %p47
        %p385 = pneg %p44
        %s386 = sand.u32 %s60, 1
        %s387 = scalar_lea.sflag [#allocation3], %s386
        %s388 = sand.u32 %s60, 1
        %s389 = smul.addr %s388, 8
        %s390 = scalar_lea.vmem [#allocation2], %s389
        %p391 = pneg %p73
        %p392 = pneg %p70
        %p393 = pneg %p94
        %p394 = pneg %p91
        %p395 = pneg %p115
        %p396 = pneg %p112
        %p397 = pneg %p136
        %p398 = pneg %p133
        %p399 = pneg %p157
        %p400 = pneg %p154
        %p401 = pneg %p178
        %p402 = pneg %p175
        %p403 = pneg %p199
        %p404 = pneg %p196
        %p405 = pneg %p220
        %p406 = pneg %p217
        %p407 = pneg %p246
        %p408 = pneg %p243
        %s409 = sand.u32 %s233, 1
        %s410 = scalar_lea.sflag [#allocation4], %s409
        %s411 = sand.u32 %s233, 1
        %s412 = smul.addr %s411, 8
        %s413 = scalar_lea.vmem [#allocation10], %s412
        %p414 = pneg %p267
        %p415 = pneg %p264
        %p416 = scmp.eq.s32.totalorder %s31, 0
        // Predicated region
        $region73: #{rnn_forward_seq.1} parent=55 // pred_check
          %p417 = pneg %p416
        $region74: #{rnn_forward_seq.1} parent=55 // pred_check_branch
          %419 = sbr.rel (%p417) target = $region76
        $region75: #{rnn_forward_seq.1} parent=55 // pred_region
          %v420 = vld [vmem:[%s2] sm:$0xff]
          %vm421 = vcmask 261120
          %422 = vst.msk [vmem:[#allocation11] sm:$0xff] %vm421, %v420
        $region76: #{rnn_forward_seq.1} parent=55 // pred_fallthru
          _
        %v423 = vld [vmem:[#allocation11] sm:$0xff]
        %v424 = vld [vmem:[%s367] sm:$0xff]
        %v425 = vld [vmem:[%s0] sm:$0xff]
        %v426 = vld [vmem:[%s3] sm:$0xf]
        %v427 = vld [vmem:[%s4] sm:$0xff]
        %vm428 = vcmask 64512
        %v430 = vsel %vm428, %v424, 0
        %432 = vmatprep.subr.mxu0 0.0
        %433 = vmatpush1.msra.mxu0 0.0
        %434 = vmatprep.subr.mxu0 0.0
        %435 = vmatpush1.msra.mxu0 0.0
        %436 = vmatprep.subr.mxu0 0.0
        %437 = vmatpush1.msra.mxu0 0.0
        %438 = vmatprep.subr.mxu0 0.0
        %439 = vmatpush1.msra.mxu0 0.0
        %440 = vmatprep.subr.mxu0 0.0
        %441 = vmatpush1.msra.mxu0 0.0
        %442 = vmatprep.subr.mxu0 0.0
        %443 = vmatpush1.msra.mxu0 0.0
        %444 = vmatprep.subr.mxu0 0.0
        %445 = vmatpush1.msra.mxu0 0.0
        %446 = vmatprep.subr.mxu0 0.0
        %447 = vmatpush1.msra.mxu0 0.0
        %448 = vmatprep.subr.mxu0 0.0
        %449 = vmatpush1.msra.mxu0 0.0
        %450 = vmatprep.subr.mxu0 0.0
        %451 = vmatpush1.msra.mxu0 0.0
        %452 = vmatprep.subr.mxu0 0.0
        %453 = vmatpush1.msra.mxu0 0.0
        %454 = vmatprep.subr.mxu0 0.0
        %455 = vmatpush1.msra.mxu0 0.0
        %456 = vmatprep.subr.mxu0 0.0
        %457 = vmatpush1.msra.mxu0 0.0
        %458 = vmatprep.subr.mxu0 0.0
        %459 = vmatpush1.msra.mxu0 0.0
        %460 = vmatprep.subr.mxu0 0.0
        %461 = vmatpush1.msra.mxu0 0.0
        %462 = vmatprep.subr.mxu0 0.0
        %463 = vmatpush1.msra.mxu0 %v427
        %464 = vmatprep.subr.mxu0 0.0
        %465 = vmatpush2.msra.mxu0 0.0
        %466 = vmatprep.subr.mxu0 0.0
        %467 = vmatpush2.msra.mxu0 0.0
        %468 = vmatprep.subr.mxu0 0.0
        %469 = vmatpush2.msra.mxu0 0.0
        %470 = vmatprep.subr.mxu0 0.0
        %471 = vmatpush2.msra.mxu0 0.0
        %472 = vmatprep.subr.mxu0 0.0
        %473 = vmatpush2.msra.mxu0 0.0
        %474 = vmatprep.subr.mxu0 0.0
        %475 = vmatpush2.msra.mxu0 0.0
        %476 = vmatprep.subr.mxu0 0.0
        %477 = vmatpush2.msra.mxu0 0.0
        %478 = vmatprep.subr.mxu0 0.0
        %479 = vmatpush2.msra.mxu0 0.0
        %480 = vmatprep.subr.mxu0 0.0
        %481 = vmatpush2.msra.mxu0 0.0
        %482 = vmatprep.subr.mxu0 0.0
        %483 = vmatpush2.msra.mxu0 0.0
        %484 = vmatprep.subr.mxu0 0.0
        %485 = vmatpush2.msra.mxu0 0.0
        %486 = vmatprep.subr.mxu0 0.0
        %487 = vmatpush2.msra.mxu0 0.0
        %488 = vmatprep.subr.mxu0 0.0
        %489 = vmatpush2.msra.mxu0 0.0
        %490 = vmatprep.subr.mxu0 0.0
        %491 = vmatpush2.msra.mxu0 0.0
        %492 = vmatprep.subr.mxu0 0.0
        %493 = vmatpush2.msra.mxu0 0.0
        %494 = vmatprep.subr.mxu0 0.0
        %495 = vmatpush2.msra.mxu0 0.0
        %496 = vmatprep.mubr.f32.mxu0 0.0
        %497 = vmatmul.mubr.f32.gmra.mxu0 %v430
        %v498 = vpop.f32.mrf.mxu0
        %v499 = vadd.f32 0.0, %v498
        %v500 = vpop.f32.mrf.mxu0
        %501 = vdwg.mxu0
        %vm502 = vcmask 31744
        %v504 = vsel %vm502, %v425, 0
        %vm506 = vcmask 1043456
        %v508 = vsel %vm506, %v426, 0
        %510 = vmatprep.subr.mxu0 0.0
        %511 = vmatpush1.msra.mxu0 0.0
        %512 = vmatprep.subr.mxu0 0.0
        %513 = vmatpush1.msra.mxu0 0.0
        %514 = vmatprep.subr.mxu0 0.0
        %515 = vmatpush1.msra.mxu0 0.0
        %516 = vmatprep.subr.mxu0 0.0
        %517 = vmatpush1.msra.mxu0 0.0
        %518 = vmatprep.subr.mxu0 0.0
        %519 = vmatpush1.msra.mxu0 0.0
        %520 = vmatprep.subr.mxu0 0.0
        %521 = vmatpush1.msra.mxu0 0.0
        %522 = vmatprep.subr.mxu0 0.0
        %523 = vmatpush1.msra.mxu0 0.0
        %524 = vmatprep.subr.mxu0 0.0
        %525 = vmatpush1.msra.mxu0 0.0
        %526 = vmatprep.subr.mxu0 0.0
        %527 = vmatpush1.msra.mxu0 0.0
        %528 = vmatprep.subr.mxu0 0.0
        %529 = vmatpush1.msra.mxu0 0.0
        %530 = vmatprep.subr.mxu0 0.0
        %531 = vmatpush1.msra.mxu0 0.0
        %532 = vmatprep.subr.mxu0 0.0
        %533 = vmatpush1.msra.mxu0 0.0
        %534 = vmatprep.subr.mxu0 0.0
        %535 = vmatpush1.msra.mxu0 0.0
        %536 = vmatprep.subr.mxu0 0.0
        %537 = vmatpush1.msra.mxu0 0.0
        %538 = vmatprep.subr.mxu0 0.0
        %539 = vmatpush1.msra.mxu0 0.0
        %540 = vmatprep.subr.mxu0 0.0
        %541 = vmatpush1.msra.mxu0 %v508
        %542 = vmatprep.subr.mxu0 0.0
        %543 = vmatpush2.msra.mxu0 0.0
        %544 = vmatprep.subr.mxu0 0.0
        %545 = vmatpush2.msra.mxu0 0.0
        %546 = vmatprep.subr.mxu0 0.0
        %547 = vmatpush2.msra.mxu0 0.0
        %548 = vmatprep.subr.mxu0 0.0
        %549 = vmatpush2.msra.mxu0 0.0
        %550 = vmatprep.subr.mxu0 0.0
        %551 = vmatpush2.msra.mxu0 0.0
        %552 = vmatprep.subr.mxu0 0.0
        %553 = vmatpush2.msra.mxu0 0.0
        %554 = vmatprep.subr.mxu0 0.0
        %555 = vmatpush2.msra.mxu0 0.0
        %556 = vmatprep.subr.mxu0 0.0
        %557 = vmatpush2.msra.mxu0 0.0
        %558 = vmatprep.subr.mxu0 0.0
        %559 = vmatpush2.msra.mxu0 0.0
        %560 = vmatprep.subr.mxu0 0.0
        %561 = vmatpush2.msra.mxu0 0.0
        %562 = vmatprep.subr.mxu0 0.0
        %563 = vmatpush2.msra.mxu0 0.0
        %564 = vmatprep.subr.mxu0 0.0
        %565 = vmatpush2.msra.mxu0 0.0
        %566 = vmatprep.subr.mxu0 0.0
        %567 = vmatpush2.msra.mxu0 0.0
        %568 = vmatprep.subr.mxu0 0.0
        %569 = vmatpush2.msra.mxu0 0.0
        %570 = vmatprep.subr.mxu0 0.0
        %571 = vmatpush2.msra.mxu0 0.0
        %572 = vmatprep.subr.mxu0 0.0
        %573 = vmatpush2.msra.mxu0 0.0
        %574 = vmatprep.mubr.f32.mxu0 0.0
        %575 = vmatmul.mubr.f32.gmra.mxu0 %v504
        %v576 = vpop.f32.mrf.mxu0
        %v577 = vadd.f32 %v499, %v576
        %v578 = vpop.f32.mrf.mxu0
        %579 = vdwg.mxu0
        %v580 = vld [vmem:[#allocation5] sm:$0xff]
        %v581 = vld [vmem:[#allocation5 + $0x8] sm:$0xff]
        %v582 = vld [vmem:[#allocation5 + $0x10] sm:$0xff]
        %v583 = vld [vmem:[#allocation5 + $0x18] sm:$0xff]
        %vm584 = vcmask 261120
        %v586 = vsel %vm584, %v423, 0
        %588 = vmatprep.subr.mxu0 0.0
        %589 = vmatpush1.msra.mxu0 0.0
        %590 = vmatprep.subr.mxu0 0.0
        %591 = vmatpush1.msra.mxu0 0.0
        %592 = vmatprep.subr.mxu0 0.0
        %593 = vmatpush1.msra.mxu0 0.0
        %594 = vmatprep.subr.mxu0 0.0
        %595 = vmatpush1.msra.mxu0 0.0
        %596 = vmatprep.subr.mxu0 0.0
        %597 = vmatpush1.msra.mxu0 0.0
        %598 = vmatprep.subr.mxu0 0.0
        %599 = vmatpush1.msra.mxu0 0.0
        %600 = vmatprep.subr.mxu0 0.0
        %601 = vmatpush1.msra.mxu0 0.0
        %602 = vmatprep.subr.mxu0 0.0
        %603 = vmatpush1.msra.mxu0 0.0
        %604 = vmatprep.subr.mxu0 0.0
        %605 = vmatpush1.msra.mxu0 0.0
        %606 = vmatprep.subr.mxu0 0.0
        %607 = vmatpush1.msra.mxu0 0.0
        %608 = vmatprep.subr.mxu0 0.0
        %609 = vmatpush1.msra.mxu0 0.0
        %610 = vmatprep.subr.mxu0 0.0
        %611 = vmatpush1.msra.mxu0 0.0
        %612 = vmatprep.subr.mxu0 0.0
        %613 = vmatpush1.msra.mxu0 %v583
        %614 = vmatprep.subr.mxu0 0.0
        %615 = vmatpush1.msra.mxu0 %v582
        %616 = vmatprep.subr.mxu0 0.0
        %617 = vmatpush1.msra.mxu0 %v581
        %618 = vmatprep.subr.mxu0 0.0
        %619 = vmatpush1.msra.mxu0 %v580
        %620 = vmatprep.subr.mxu0 0.0
        %621 = vmatpush2.msra.mxu0 0.0
        %622 = vmatprep.subr.mxu0 0.0
        %623 = vmatpush2.msra.mxu0 0.0
        %624 = vmatprep.subr.mxu0 0.0
        %625 = vmatpush2.msra.mxu0 0.0
        %626 = vmatprep.subr.mxu0 0.0
        %627 = vmatpush2.msra.mxu0 0.0
        %628 = vmatprep.subr.mxu0 0.0
        %629 = vmatpush2.msra.mxu0 0.0
        %630 = vmatprep.subr.mxu0 0.0
        %631 = vmatpush2.msra.mxu0 0.0
        %632 = vmatprep.subr.mxu0 0.0
        %633 = vmatpush2.msra.mxu0 0.0
        %634 = vmatprep.subr.mxu0 0.0
        %635 = vmatpush2.msra.mxu0 0.0
        %636 = vmatprep.subr.mxu0 0.0
        %637 = vmatpush2.msra.mxu0 0.0
        %638 = vmatprep.subr.mxu0 0.0
        %639 = vmatpush2.msra.mxu0 0.0
        %640 = vmatprep.subr.mxu0 0.0
        %641 = vmatpush2.msra.mxu0 0.0
        %642 = vmatprep.subr.mxu0 0.0
        %643 = vmatpush2.msra.mxu0 0.0
        %644 = vmatprep.subr.mxu0 0.0
        %645 = vmatpush2.msra.mxu0 0.0
        %646 = vmatprep.subr.mxu0 0.0
        %647 = vmatpush2.msra.mxu0 0.0
        %648 = vmatprep.subr.mxu0 0.0
        %649 = vmatpush2.msra.mxu0 0.0
        %650 = vmatprep.subr.mxu0 0.0
        %651 = vmatpush2.msra.mxu0 0.0
        %652 = vmatprep.mubr.f32.mxu0 0.0
        %653 = vmatmul.mubr.f32.gmra.mxu0 %v586
        %v654 = vpop.f32.mrf.mxu0
        %v655 = vadd.f32 0.0, %v654
        %v656 = vpop.f32.mrf.mxu0
        %657 = vdwg.mxu0
        %v658 = vadd.f32 %v577, %v655
        %v659 = vld [vmem:[%s6] sm:$0x1]
        %v661 = vlaneseq
        %v662 = vshrl.u32 %v661, 7
        %v663 = vsub.s32 0, %v662
        %v664 = vrot.slane %v659, %v663
        %v666 = vadd.f32 %v658, %v664
        %v667 = vld [vmem:[#allocation7] sm:$0xff]
        %v668 = vld [vmem:[#allocation7 + $0x8] sm:$0xff]
        %v669 = vld [vmem:[#allocation7 + $0x10] sm:$0xff]
        %v670 = vld [vmem:[#allocation7 + $0x18] sm:$0xff]
        %v671 = vld [vmem:[#allocation7 + $0x20] sm:$0xff]
        %v672 = vld [vmem:[#allocation8] sm:$0x1]
        %v674 = vlaneseq
        %v675 = vshrl.u32 %v674, 7
        %v676 = vsub.s32 0, %v675
        %v677 = vrot.slane %v672, %v676
        %vm679 = vcmask 326656
        %v681 = vsel %vm679, %v666, 0
        %683 = vmatprep.subr.mxu0 0.0
        %684 = vmatpush1.msra.mxu0 0.0
        %685 = vmatprep.subr.mxu0 0.0
        %686 = vmatpush1.msra.mxu0 0.0
        %687 = vmatprep.subr.mxu0 0.0
        %688 = vmatpush1.msra.mxu0 0.0
        %689 = vmatprep.subr.mxu0 0.0
        %690 = vmatpush1.msra.mxu0 0.0
        %691 = vmatprep.subr.mxu0 0.0
        %692 = vmatpush1.msra.mxu0 0.0
        %693 = vmatprep.subr.mxu0 0.0
        %694 = vmatpush1.msra.mxu0 0.0
        %695 = vmatprep.subr.mxu0 0.0
        %696 = vmatpush1.msra.mxu0 0.0
        %697 = vmatprep.subr.mxu0 0.0
        %698 = vmatpush1.msra.mxu0 0.0
        %699 = vmatprep.subr.mxu0 0.0
        %700 = vmatpush1.msra.mxu0 0.0
        %701 = vmatprep.subr.mxu0 0.0
        %702 = vmatpush1.msra.mxu0 0.0
        %703 = vmatprep.subr.mxu0 0.0
        %704 = vmatpush1.msra.mxu0 0.0
        %705 = vmatprep.subr.mxu0 0.0
        %706 = vmatpush1.msra.mxu0 %v671
        %707 = vmatprep.subr.mxu0 0.0
        %708 = vmatpush1.msra.mxu0 %v670
        %709 = vmatprep.subr.mxu0 0.0
        %710 = vmatpush1.msra.mxu0 %v669
        %711 = vmatprep.subr.mxu0 0.0
        %712 = vmatpush1.msra.mxu0 %v668
        %713 = vmatprep.subr.mxu0 0.0
        %714 = vmatpush1.msra.mxu0 %v667
        %715 = vmatprep.subr.mxu0 0.0
        %716 = vmatpush2.msra.mxu0 0.0
        %717 = vmatprep.subr.mxu0 0.0
        %718 = vmatpush2.msra.mxu0 0.0
        %719 = vmatprep.subr.mxu0 0.0
        %720 = vmatpush2.msra.mxu0 0.0
        %721 = vmatprep.subr.mxu0 0.0
        %722 = vmatpush2.msra.mxu0 0.0
        %723 = vmatprep.subr.mxu0 0.0
        %724 = vmatpush2.msra.mxu0 0.0
        %725 = vmatprep.subr.mxu0 0.0
        %726 = vmatpush2.msra.mxu0 0.0
        %727 = vmatprep.subr.mxu0 0.0
        %728 = vmatpush2.msra.mxu0 0.0
        %729 = vmatprep.subr.mxu0 0.0
        %730 = vmatpush2.msra.mxu0 0.0
        %731 = vmatprep.subr.mxu0 0.0
        %732 = vmatpush2.msra.mxu0 0.0
        %733 = vmatprep.subr.mxu0 0.0
        %734 = vmatpush2.msra.mxu0 0.0
        %735 = vmatprep.subr.mxu0 0.0
        %736 = vmatpush2.msra.mxu0 0.0
        %737 = vmatprep.subr.mxu0 0.0
        %738 = vmatpush2.msra.mxu0 0.0
        %739 = vmatprep.subr.mxu0 0.0
        %740 = vmatpush2.msra.mxu0 0.0
        %741 = vmatprep.subr.mxu0 0.0
        %742 = vmatpush2.msra.mxu0 0.0
        %743 = vmatprep.subr.mxu0 0.0
        %744 = vmatpush2.msra.mxu0 0.0
        %745 = vmatprep.subr.mxu0 0.0
        %746 = vmatpush2.msra.mxu0 0.0
        %747 = vmatprep.mubr.f32.mxu0 0.0
        %748 = vmatmul.mubr.f32.gmra.mxu0 %v681
        %v749 = vpop.f32.mrf.mxu0
        %v750 = vadd.f32 %v677, %v749
        %v751 = vpop.f32.mrf.mxu0
        %752 = vdwg.mxu0
        %753 = vmax.xlane.f32.xlu0 %v750
        %v754 = vpop.xlane.xlu0 %753
        %v755 = vsub.f32 %v750, %v754
        %v756 = vmul.f32 %v755, 1.442695
        %v757 = vpow.pop %v756
        %758 = vadd.xlane.f32.xlu0 %v757
        %v759 = vpop.xlane.xlu0 %758
        %v760 = vlog2.pop %v759
        %v761 = vmul.f32 %v760, 0.6931472
        %v762 = vsub.f32 %v755, %v761
        %763 = vst [vmem:[%s413] sm:$0xff] %v762
        %764 = vst.msk [vmem:[#allocation11] sm:$0xff] %vm584, %v666
        %s765 = sand.u32 %s233, 1
        %s766 = scalar_lea.sflag [#allocation4], %s765
        %s767 = sand.u32 %s233, 1
        %s768 = smul.addr %s767, 8
        %s769 = scalar_lea.vmem [#allocation10], %s768
        // Predicated region
        $region77: #{rnn_forward_seq.1} parent=55 // pred_check
          %p770 = pneg %p243
        $region78: #{rnn_forward_seq.1} parent=55 // pred_check_branch
          %772 = sbr.rel (%p770) target = $region80
        $region79: #{rnn_forward_seq.1} parent=55 // pred_region
          %s774 = ssub.s32 128, 128
          %775 = vsyncadd %s766, %s774
          %s776 = smul.addr %s31, 128
          %s777 = scalar_lea.hbm %s9, %s776
          %s779 = sshll.u32 %s769, 4
          %s780 = int_to_ptr.vmem [resolvable:$true] %s779
          %782 = dma.vmem_to_hbm [thread:$0]  %s780, 128, %s777, %s766
        $region80: #{rnn_forward_seq.1} parent=55 // pred_fallthru
          _
        // Predicated region
        $region81: #{rnn_forward_seq.1} parent=55 // pred_check
          %p783 = pneg %p264
        $region82: #{rnn_forward_seq.1} parent=55 // pred_check_branch
          %785 = sbr.rel (%p783) target = $region84
        $region83: #{rnn_forward_seq.1} parent=55 // pred_region
          %s787 = ssub.s32 128, 128
          %788 = vsyncadd [#allocation12], %s787
          %s790 = sshll.u32 [#allocation11], 4
          %s791 = int_to_ptr.vmem [resolvable:$true] %s790
          %793 = dma.vmem_to_hbm [thread:$0]  %s791, 128, %s10, [#allocation12]
        $region84: #{rnn_forward_seq.1} parent=55 // pred_fallthru
          _
        // Predicated region
        $region85: #{rnn_forward_seq.1} parent=55 // pred_check
          %p794 = pneg %p264
        $region86: #{rnn_forward_seq.1} parent=55 // pred_check_branch
          %796 = sbr.rel (%p794) target = $region88
        $region87: #{rnn_forward_seq.1} parent=55 // pred_region
          %797 = dma.done [#allocation12], 128
        $region88: #{rnn_forward_seq.1} parent=55 // pred_fallthru
          _
      $region56: #{rnn_forward_seq.1} parent=5 // pred_fallthru
        _
      %p798 = scmp.le.s32.totalorder 2, %s26
      // Predicated region
      $region89: #{rnn_forward_seq.1} parent=5 // pred_check
        %p799 = pneg %p798
      $region90: #{rnn_forward_seq.1} parent=5 // pred_check_branch
        %801 = sbr.rel (%p799) target = $region92
      $region91: #{rnn_forward_seq.1} parent=5 // pred_region
        %s802 = ssub.s32 %s26, 2
        // Predicated region
        $region93: #{rnn_forward_seq.1} parent=91 // pred_check
          %p803 = pneg %p249
        $region94: #{rnn_forward_seq.1} parent=91 // pred_check_branch
          %805 = sbr.rel (%p803) target = $region96
        $region95: #{rnn_forward_seq.1} parent=91 // pred_region
          %s806 = sand.u32 %s234, 1
          %s807 = scalar_lea.sflag [#allocation4], %s806
          %s808 = sand.u32 %s234, 1
          %s809 = smul.addr %s808, 8
          %s810 = scalar_lea.vmem [#allocation10], %s809
          %811 = dma.done %s807, 128
        $region96: #{rnn_forward_seq.1} parent=91 // pred_fallthru
          _
      $region92: #{rnn_forward_seq.1} parent=5 // pred_fallthru
        _
    $region6: #{rnn_forward_seq.1} parent=1 // loop_footer
      %s30 = sadd.s32 1, %s26
    $region7: #{rnn_forward_seq.1} parent=1 // loop_footer_branch
      %25 = sbr.rel target = $region3
    $region8: #{rnn_forward_seq.1} parent=1 // loop_exit
      _
    %812 = vsyncpa [#allocation3], 1
    %s813 = scalar_lea.sflag [#allocation3], 1
    %814 = vsyncpa %s813, 1
    %815 = vsyncpa [#allocation6], 1
    %816 = vsyncpa [#allocation9], 1
    %817 = vsyncpa [#allocation4], 1
    %s818 = scalar_lea.sflag [#allocation4], 1
    %819 = vsyncpa %s818, 1
    %820 = vsyncpa [#allocation12], 1

</llo_original>
